<compile_context>
chip_gen: v6e
topology: v6e:2x2x1
jax: 0.10.0
libtpu: 0.0.40
codegen_flags: <defaults>
</compile_context>

<pallas_src>
import functools

import jax
import jax.numpy as jnp
from jax.experimental import pallas as pl
from jax.experimental.pallas import tpu as pltpu


def _round_up(x, m):
    return (x + m - 1) // m * m


def _linear_norm_kernel(x_ref, w_ref, b_ref, g_ref, beta_ref, o_ref, acc_ref,
                        *, eps, n_valid, d_out_pad):
    # x_ref:    (tm, tk)        tile of input rows / K-slice
    # w_ref:    (tk, d_out_pad) K-slice of weight (matmul layout)
    # b_ref:    (1, d_out_pad)  linear bias
    # g_ref:    (1, d_out_pad)  layernorm gamma
    # beta_ref: (1, d_out_pad)  layernorm beta
    # o_ref:    (tm, d_out_pad) output tile
    # acc_ref:  (tm, d_out_pad) f32 accumulator scratch
    k = pl.program_id(1)

    @pl.when(k == 0)
    def _():
        acc_ref[...] = jnp.zeros_like(acc_ref)

    # Native-dtype operands straight to the MXU; f32 accumulation.
    acc_ref[...] += jnp.dot(x_ref[...], w_ref[...],
                            preferred_element_type=jnp.float32)

    @pl.when(k == pl.num_programs(1) - 1)
    def _():
        y = acc_ref[...] + b_ref[...].astype(jnp.float32)

        padded = d_out_pad != n_valid
        if padded:
            col = jax.lax.broadcasted_iota(jnp.int32, y.shape, 1)
            valid = col < n_valid
            y = jnp.where(valid, y, 0.0)

        inv_n = jnp.float32(1.0 / n_valid)
        mean = jnp.sum(y, axis=-1, keepdims=True) * inv_n
        centered = y - mean
        if padded:
            centered = jnp.where(valid, centered, 0.0)
        var = jnp.sum(centered * centered, axis=-1, keepdims=True) * inv_n
        inv_std = jax.lax.rsqrt(var + eps)

        out = (centered * inv_std) * g_ref[...].astype(jnp.float32) \
              + beta_ref[...].astype(jnp.float32)
        o_ref[...] = out.astype(o_ref.dtype)


def linear_norm(x, weight, bias, gamma, beta, *, eps=1e-5, tm=256, tk=512):
    """x: [..., D_in]; weight: [D_out, D_in] (PyTorch layout); bias/gamma/beta: [D_out]."""
    orig_shape = x.shape
    d_in = orig_shape[-1]
    d_out = weight.shape[0]

    x2d = x.reshape(-1, d_in)
    m = x2d.shape[0]

    # --- pad everything to TPU-friendly multiples -------------------------
    tm = _round_up(max(tm, 16), 128)
    tk = _round_up(max(tk, 128), 128)

    d_in_p = _round_up(d_in, 128)
    d_out_p = _round_up(d_out, 128)          # lane-dense output stores

    tm_eff = min(tm, _round_up(m, 128))      # don't over-tile tiny inputs
    m_p = _round_up(m, tm_eff)

    tk_eff = min(tk, d_in_p)
    while d_in_p % tk_eff != 0:              # tk must divide padded D_in
        tk_eff -= 128

    x_p = jnp.pad(x2d, ((0, m_p - m), (0, d_in_p - d_in)))
    w_t = weight.T                            # (D_in, D_out) matmul layout
    w_p = jnp.pad(w_t, ((0, d_in_p - d_in), (0, d_out_p - d_out)))
    b_p = jnp.pad(bias, (0, d_out_p - d_out)).reshape(1, d_out_p)
    g_p = jnp.pad(gamma, (0, d_out_p - d_out)).reshape(1, d_out_p)
    beta_p = jnp.pad(beta, (0, d_out_p - d_out)).reshape(1, d_out_p)

    kernel = functools.partial(_linear_norm_kernel, eps=eps,
                               n_valid=d_out, d_out_pad=d_out_p)

    grid = (m_p // tm_eff, d_in_p // tk_eff)

    out = pl.pallas_call(
        kernel,
        out_shape=jax.ShapeDtypeStruct((m_p, d_out_p), x.dtype),
        grid_spec=pltpu.PrefetchScalarGridSpec(
            num_scalar_prefetch=0,
            grid=grid,
            in_specs=[
                pl.BlockSpec((tm_eff, tk_eff), lambda i, k: (i, k)),
                pl.BlockSpec((tk_eff, d_out_p), lambda i, k: (k, 0)),
                pl.BlockSpec((1, d_out_p), lambda i, k: (0, 0)),
                pl.BlockSpec((1, d_out_p), lambda i, k: (0, 0)),
                pl.BlockSpec((1, d_out_p), lambda i, k: (0, 0)),
            ],
            out_specs=pl.BlockSpec((tm_eff, d_out_p), lambda i, k: (i, 0)),
            scratch_shapes=[pltpu.VMEM((tm_eff, d_out_p), jnp.float32)],
        ),
        compiler_params=pltpu.CompilerParams(
            dimension_semantics=("parallel", "arbitrary"),
            vmem_limit_bytes=48 * 1024 * 1024,
        ),
    )(x_p, w_p, b_p, g_p, beta_p)

    out = out[:m, :d_out]
    return out.reshape(*orig_shape[:-1], d_out)


if __name__ == "__main__":
    # Small shapes implied by the module: x is [batch, seq, dim_in]
    batch, seq, dim_in, dim_out = 2, 8, 32, 32

    key = jax.random.PRNGKey(0)
    kx, kw, kb = jax.random.split(key, 3)

    x = jax.random.normal(kx, (batch, seq, dim_in), dtype=jnp.float32)

    # Deterministic param init matching torch.nn.Linear defaults:
    # weight, bias ~ U(-1/sqrt(dim_in), 1/sqrt(dim_in)); LayerNorm: gamma=1, beta=0.
    bound = 1.0 / (dim_in ** 0.5)
    weight = jax.random.uniform(kw, (dim_out, dim_in), jnp.float32, -bound, bound)
    bias = jax.random.uniform(kb, (dim_out,), jnp.float32, -bound, bound)
    gamma = jnp.ones((dim_out,), jnp.float32)
    beta = jnp.zeros((dim_out,), jnp.float32)

    out = linear_norm(x, weight, bias, gamma, beta)
    out = jax.block_until_ready(out)

    # Pure-JAX reference check
    y_ref = x @ weight.T + bias
    mean = y_ref.mean(-1, keepdims=True)
    var = ((y_ref - mean) ** 2).mean(-1, keepdims=True)
    ref = (y_ref - mean) / jnp.sqrt(var + 1e-5) * gamma + beta
    assert jnp.allclose(out, ref, atol=1e-5, rtol=1e-5), "mismatch vs reference"

    print("KERNEL_OK")
</pallas_src>

<mosaic_0001>
module attributes {stable_mosaic.version = 11 : i64} {
  func.func @_linear_norm_kernel(%arg0: i32, %arg1: i32, %arg2: memref<128x128xf32, #tpu.memory_space<vmem>>, %arg3: memref<128x128xf32, #tpu.memory_space<vmem>>, %arg4: memref<1x128xf32, #tpu.memory_space<vmem>>, %arg5: memref<1x128xf32, #tpu.memory_space<vmem>>, %arg6: memref<1x128xf32, #tpu.memory_space<vmem>>, %arg7: memref<128x128xf32, #tpu.memory_space<vmem>>, %arg8: memref<128x128xf32, #tpu.memory_space<vmem>>) attributes {dimension_semantics = [#tpu.dimension_semantics<parallel>, #tpu.dimension_semantics<arbitrary>], iteration_bounds = array<i64: 1, 1>, scalar_prefetch = 0 : i64, scratch_operands = 1 : i64, tpu.core_type = #tpu.core_type<tc>, window_params = [{transform_indices = @transform_0, window_bounds = array<i64: 128, 128>}, {transform_indices = @transform_1, window_bounds = array<i64: 128, 128>}, {pipeline_mode = #tpu.pipeline_mode<synchronous>, transform_indices = @transform_2, window_bounds = array<i64: 1, 128>}, {pipeline_mode = #tpu.pipeline_mode<synchronous>, transform_indices = @transform_3, window_bounds = array<i64: 1, 128>}, {pipeline_mode = #tpu.pipeline_mode<synchronous>, transform_indices = @transform_4, window_bounds = array<i64: 1, 128>}, {transform_indices = @transform_5, window_bounds = array<i64: 128, 128>}]} {
    %c0_i32 = arith.constant 0 : i32
    %0 = arith.cmpi eq, %arg1, %c0_i32 : i32
    %1 = arith.extui %0 : i1 to i32
    %c0_i32_0 = arith.constant 0 : i32
    %2 = arith.cmpi ne, %1, %c0_i32_0 : i32
    scf.if %2 {
      %cst_10 = arith.constant 0.000000e+00 : f32
      %12 = vector.broadcast %cst_10 : f32 to vector<128x128xf32>
      %c0_11 = arith.constant 0 : index
      %c0_12 = arith.constant 0 : index
      %13 = vector.load %arg8[%c0_11, %c0_12] : memref<128x128xf32, #tpu.memory_space<vmem>>, vector<128x128xf32>
      tpu.vector_store %arg8[%c0_11, %c0_12], %12 {strides = array<i32>} : memref<128x128xf32, #tpu.memory_space<vmem>>, vector<128x128xf32>,
    } else {
    }
    %c0 = arith.constant 0 : index
    %c0_1 = arith.constant 0 : index
    %3 = vector.load %arg8[%c0, %c0_1] : memref<128x128xf32, #tpu.memory_space<vmem>>, vector<128x128xf32>
    %c0_2 = arith.constant 0 : index
    %c0_3 = arith.constant 0 : index
    %4 = vector.load %arg2[%c0_2, %c0_3] : memref<128x128xf32, #tpu.memory_space<vmem>>, vector<128x128xf32>
    %c0_4 = arith.constant 0 : index
    %c0_5 = arith.constant 0 : index
    %5 = vector.load %arg3[%c0_4, %c0_5] : memref<128x128xf32, #tpu.memory_space<vmem>>, vector<128x128xf32>
    %cst = arith.constant dense<0.000000e+00> : vector<128x128xf32>
    %6 = tpu.matmul %4, %5, %cst {dimension_numbers = #tpu.dot_dimension_numbers<[1], [0], [0], [1], [0, 0, 1, 1], [], []>} : vector<128x128xf32>, vector<128x128xf32>, vector<128x128xf32> -> vector<128x128xf32>
    %7 = arith.addf %3, %6 : vector<128x128xf32>
    %c0_6 = arith.constant 0 : index
    %c0_7 = arith.constant 0 : index
    %8 = vector.load %arg8[%c0_6, %c0_7] : memref<128x128xf32, #tpu.memory_space<vmem>>, vector<128x128xf32>
    tpu.vector_store %arg8[%c0_6, %c0_7], %7 {strides = array<i32>} : memref<128x128xf32, #tpu.memory_space<vmem>>, vector<128x128xf32>,
    %c0_i32_8 = arith.constant 0 : i32
    %9 = arith.cmpi eq, %arg1, %c0_i32_8 : i32
    %10 = arith.extui %9 : i1 to i32
    %c0_i32_9 = arith.constant 0 : i32
    %11 = arith.cmpi ne, %10, %c0_i32_9 : i32
    scf.if %11 {
      %c0_10 = arith.constant 0 : index
      %c0_11 = arith.constant 0 : index
      %12 = vector.load %arg8[%c0_10, %c0_11] : memref<128x128xf32, #tpu.memory_space<vmem>>, vector<128x128xf32>
      %c0_12 = arith.constant 0 : index
      %c0_13 = arith.constant 0 : index
      %13 = vector.load %arg4[%c0_12, %c0_13] : memref<1x128xf32, #tpu.memory_space<vmem>>, vector<1x128xf32>
      %14 = vector.broadcast %13 : vector<1x128xf32> to vector<128x128xf32>
      %15 = arith.addf %12, %14 : vector<128x128xf32>
      %16 = tpu.iota {dimensions = array<i32: 1>} : vector<128x128xi32>
      %c32_i32 = arith.constant 32 : i32
      %17 = vector.broadcast %c32_i32 : i32 to vector<128x128xi32>
      %18 = arith.cmpi slt, %16, %17 : vector<128x128xi32>
      %cst_14 = arith.constant 0.000000e+00 : f32
      %19 = vector.broadcast %cst_14 : f32 to vector<128x128xf32>
      %20 = arith.select %18, %15, %19 : vector<128x128xi1>, vector<128x128xf32>
      %cst_15 = arith.constant dense<0.000000e+00> : vector<128xf32>
      %21 = vector.multi_reduction <add>, %20, %cst_15 [1] : vector<128x128xf32> to vector<128xf32>
      %22 = vector.shape_cast %21 : vector<128xf32> to vector<128x1xf32>
      %cst_16 = arith.constant 3.125000e-02 : f32
      %23 = vector.broadcast %cst_16 : f32 to vector<128x1xf32>
      %24 = arith.mulf %22, %23 : vector<128x1xf32>
      %25 = vector.broadcast %24 : vector<128x1xf32> to vector<128x128xf32>
      %26 = arith.subf %20, %25 : vector<128x128xf32>
      %cst_17 = arith.constant 0.000000e+00 : f32
      %27 = vector.broadcast %cst_17 : f32 to vector<128x128xf32>
      %28 = arith.select %18, %26, %27 : vector<128x128xi1>, vector<128x128xf32>
      %29 = arith.mulf %28, %28 : vector<128x128xf32>
      %cst_18 = arith.constant dense<0.000000e+00> : vector<128xf32>
      %30 = vector.multi_reduction <add>, %29, %cst_18 [1] : vector<128x128xf32> to vector<128xf32>
      %31 = vector.shape_cast %30 : vector<128xf32> to vector<128x1xf32>
      %cst_19 = arith.constant 3.125000e-02 : f32
      %32 = vector.broadcast %cst_19 : f32 to vector<128x1xf32>
      %33 = arith.mulf %31, %32 : vector<128x1xf32>
      %cst_20 = arith.constant 9.99999974E-6 : f32
      %34 = vector.broadcast %cst_20 : f32 to vector<128x1xf32>
      %35 = arith.addf %33, %34 : vector<128x1xf32>
      %36 = math.rsqrt %35 : vector<128x1xf32>
      %37 = vector.broadcast %36 : vector<128x1xf32> to vector<128x128xf32>
      %38 = arith.mulf %28, %37 : vector<128x128xf32>
      %c0_21 = arith.constant 0 : index
      %c0_22 = arith.constant 0 : index
      %39 = vector.load %arg5[%c0_21, %c0_22] : memref<1x128xf32, #tpu.memory_space<vmem>>, vector<1x128xf32>
      %40 = vector.broadcast %39 : vector<1x128xf32> to vector<128x128xf32>
      %41 = arith.mulf %38, %40 : vector<128x128xf32>
      %c0_23 = arith.constant 0 : index
      %c0_24 = arith.constant 0 : index
      %42 = vector.load %arg6[%c0_23, %c0_24] : memref<1x128xf32, #tpu.memory_space<vmem>>, vector<1x128xf32>
      %43 = vector.broadcast %42 : vector<1x128xf32> to vector<128x128xf32>
      %44 = arith.addf %41, %43 : vector<128x128xf32>
      %c0_25 = arith.constant 0 : index
      %c0_26 = arith.constant 0 : index
      %45 = vector.load %arg7[%c0_25, %c0_26] : memref<128x128xf32, #tpu.memory_space<vmem>>, vector<128x128xf32>
      tpu.vector_store %arg7[%c0_25, %c0_26], %44 {strides = array<i32>} : memref<128x128xf32, #tpu.memory_space<vmem>>, vector<128x128xf32>,
    } else {
    }
    return
  }
  func.func @transform_0(%arg0: i32, %arg1: i32) -> (i32, i32) {
    %c0_i32 = arith.constant 0 : i32
    return %arg0, %arg1 : i32, i32
  }
  func.func @transform_1(%arg0: i32, %arg1: i32) -> (i32, i32) {
    %c0_i32 = arith.constant 0 : i32
    %c0_i32_0 = arith.constant 0 : i32
    return %arg1, %c0_i32 : i32, i32
  }
  func.func @transform_2(%arg0: i32, %arg1: i32) -> (i32, i32) {
    %c0_i32 = arith.constant 0 : i32
    %c0_i32_0 = arith.constant 0 : i32
    %c0_i32_1 = arith.constant 0 : i32
    return %c0_i32, %c0_i32_0 : i32, i32
  }
  func.func @transform_3(%arg0: i32, %arg1: i32) -> (i32, i32) {
    %c0_i32 = arith.constant 0 : i32
    %c0_i32_0 = arith.constant 0 : i32
    %c0_i32_1 = arith.constant 0 : i32
    return %c0_i32, %c0_i32_0 : i32, i32
  }
  func.func @transform_4(%arg0: i32, %arg1: i32) -> (i32, i32) {
    %c0_i32 = arith.constant 0 : i32
    %c0_i32_0 = arith.constant 0 : i32
    %c0_i32_1 = arith.constant 0 : i32
    return %c0_i32, %c0_i32_0 : i32, i32
  }
  func.func @transform_5(%arg0: i32, %arg1: i32) -> (i32, i32) {
    %c0_i32 = arith.constant 0 : i32
    %c0_i32_0 = arith.constant 0 : i32
    return %arg0, %c0_i32 : i32, i32
  }
}

</mosaic_0001>

<llo_original>
// kernel: tpu_custom_call.1
$region0: #{tpu_custom_call.1}
  #allocation0 [shape = 'u32[]', space=smem, size = 0x4, offset = 0x4, fixed_abs, tag = 'smem constant byte address 0x4 - core index']
  #allocation1 [shape = 'u32[144,128]{1,0:T(1,128)}', space=vmem, size = 0x12000, scoped, tag = 'internal scratch']
  #allocation2 [shape = 'f32[128,128]{1,0:T(8,128)}', space=vmem, size = 0x10000, scoped, tag = 'scratch operand']
  %s0 = inlined_call_operand.hbm [shape: f32[128,128], index: 0, kind: input, shape index: {}]
  %s1 = inlined_call_operand.hbm [shape: f32[128,128], index: 1, kind: input, shape index: {}]
  %s2 = inlined_call_operand.vmem [shape: f32[1,128], index: 2, kind: input, shape index: {}]
  %s3 = inlined_call_operand.vmem [shape: f32[1,128], index: 3, kind: input, shape index: {}]
  %s4 = inlined_call_operand.vmem [shape: f32[1,128], index: 4, kind: input, shape index: {}]
  %s5 = inlined_call_operand.hbm [shape: f32[128,128], index: 5, kind: output, shape index: {}]
  %s6 = sld [smem:[#allocation0]]
  $region46: #{tpu_custom_call.1} parent=0
    _
  %s8 = ssub.s32 1, %s6
  %s9 = scalar_select 0, %s8, %s6
  $region1: #{tpu_custom_call.1} parent=0
    #allocation3 [shape = 'u8[65536]{0}', space=vmem, size = 0x10000, scoped, tag = 'input window, operand 0, single buffered']
    #allocation4 [shape = 's32[1]{0}', space=sflag, size = 0x4, scoped, tag = 'scoped memory for tpu_custom_call.1']
    #allocation5 [shape = 's32[1]{0}', space=sflag, size = 0x4, scoped, tag = 'scoped memory for tpu_custom_call.1']
    #allocation6 [shape = 'u8[65536]{0}', space=vmem, size = 0x10000, scoped, tag = 'input window, operand 1, single buffered']
    #allocation7 [shape = 's32[1]{0}', space=sflag, size = 0x4, scoped, tag = 'scoped memory for tpu_custom_call.1']
    #allocation8 [shape = 'u8[65536]{0}', space=vmem, size = 0x10000, scoped, tag = 'output window, operand 0, single buffered']
    %10 = vsyncpa [#allocation4], 0
    %11 = vsyncpa [#allocation7], 0
    %12 = vsyncpa [#allocation5], 0
    // Predicated region
    $region2: #{tpu_custom_call.1} parent=1 // pred_check
      _
    $region3: #{tpu_custom_call.1} parent=1 // pred_check_branch
      %14 = sbr.rel (0) target = $region5
    $region4: #{tpu_custom_call.1} parent=1 // pred_region
      %s16 = ssub.s32 2048, 2048
      %17 = vsyncadd [#allocation4], %s16
      %s18 = sshll.u32 [#allocation3], 4
      %s19 = int_to_ptr.vmem [resolvable:$true] %s18
      %24 = dma.hbm_to_vmem [thread:$0]  %s0, 2048, %s19, [#allocation4], 128, 128, 8
    $region5: #{tpu_custom_call.1} parent=1 // pred_fallthru
      _
    // Predicated region
    $region6: #{tpu_custom_call.1} parent=1 // pred_check
      _
    $region7: #{tpu_custom_call.1} parent=1 // pred_check_branch
      %26 = sbr.rel (0) target = $region9
    $region8: #{tpu_custom_call.1} parent=1 // pred_region
      %s28 = ssub.s32 2048, 2048
      %29 = vsyncadd [#allocation7], %s28
      %s30 = sshll.u32 [#allocation6], 4
      %s31 = int_to_ptr.vmem [resolvable:$true] %s30
      %36 = dma.hbm_to_vmem [thread:$0]  %s1, 2048, %s31, [#allocation7], 128, 128, 8
    $region9: #{tpu_custom_call.1} parent=1 // pred_fallthru
      _
    // Predicated region
    $region10: #{tpu_custom_call.1} parent=1 // pred_check
      _
    $region11: #{tpu_custom_call.1} parent=1 // pred_check_branch
      %38 = sbr.rel (0) target = $region13
    $region12: #{tpu_custom_call.1} parent=1 // pred_region
      _
    $region13: #{tpu_custom_call.1} parent=1 // pred_fallthru
      _
    // Predicated region
    $region14: #{tpu_custom_call.1} parent=1 // pred_check
      _
    $region15: #{tpu_custom_call.1} parent=1 // pred_check_branch
      %40 = sbr.rel (0) target = $region17
    $region16: #{tpu_custom_call.1} parent=1 // pred_region
      _
    $region17: #{tpu_custom_call.1} parent=1 // pred_fallthru
      _
    // Predicated region
    $region18: #{tpu_custom_call.1} parent=1 // pred_check
      _
    $region19: #{tpu_custom_call.1} parent=1 // pred_check_branch
      %42 = sbr.rel (0) target = $region21
    $region20: #{tpu_custom_call.1} parent=1 // pred_region
      _
    $region21: #{tpu_custom_call.1} parent=1 // pred_fallthru
      _
    // Predicated region
    $region22: #{tpu_custom_call.1} parent=1 // pred_check
      _
    $region23: #{tpu_custom_call.1} parent=1 // pred_check_branch
      %44 = sbr.rel (0) target = $region25
    $region24: #{tpu_custom_call.1} parent=1 // pred_region
      %45 = dma.done [#allocation4], 2048
    $region25: #{tpu_custom_call.1} parent=1 // pred_fallthru
      _
    // Predicated region
    $region26: #{tpu_custom_call.1} parent=1 // pred_check
      _
    $region27: #{tpu_custom_call.1} parent=1 // pred_check_branch
      %47 = sbr.rel (0) target = $region29
    $region28: #{tpu_custom_call.1} parent=1 // pred_region
      %48 = dma.done [#allocation7], 2048
    $region29: #{tpu_custom_call.1} parent=1 // pred_fallthru
      _
    %p49 = scmp.eq.s32.totalorder 0, 0
    // Predicated region
    $region30: #{tpu_custom_call.1} parent=1 // pred_check
      %p50 = pneg %p49
    $region31: #{tpu_custom_call.1} parent=1 // pred_check_branch
      %52 = sbr.rel (%p50) target = $region33
    $region32: #{tpu_custom_call.1} parent=1 // pred_region
      %53 = vst [vmem:[#allocation2] sm:$0xff] 0.0
      %54 = vst [vmem:[#allocation2 + $0x8] sm:$0xff] 0.0
      %55 = vst [vmem:[#allocation2 + $0x10] sm:$0xff] 0.0
      %56 = vst [vmem:[#allocation2 + $0x18] sm:$0xff] 0.0
      %57 = vst [vmem:[#allocation2 + $0x20] sm:$0xff] 0.0
      %58 = vst [vmem:[#allocation2 + $0x28] sm:$0xff] 0.0
      %59 = vst [vmem:[#allocation2 + $0x30] sm:$0xff] 0.0
      %60 = vst [vmem:[#allocation2 + $0x38] sm:$0xff] 0.0
      %61 = vst [vmem:[#allocation2 + $0x40] sm:$0xff] 0.0
      %62 = vst [vmem:[#allocation2 + $0x48] sm:$0xff] 0.0
      %63 = vst [vmem:[#allocation2 + $0x50] sm:$0xff] 0.0
      %64 = vst [vmem:[#allocation2 + $0x58] sm:$0xff] 0.0
      %65 = vst [vmem:[#allocation2 + $0x60] sm:$0xff] 0.0
      %66 = vst [vmem:[#allocation2 + $0x68] sm:$0xff] 0.0
      %67 = vst [vmem:[#allocation2 + $0x70] sm:$0xff] 0.0
      %68 = vst [vmem:[#allocation2 + $0x78] sm:$0xff] 0.0
    $region33: #{tpu_custom_call.1} parent=1 // pred_fallthru
      _
    %v69 = vld [vmem:[#allocation2] sm:$0xff]
    %v70 = vld [vmem:[#allocation2 + $0x8] sm:$0xff]
    %v71 = vld [vmem:[#allocation2 + $0x10] sm:$0xff]
    %v72 = vld [vmem:[#allocation2 + $0x18] sm:$0xff]
    %v73 = vld [vmem:[#allocation2 + $0x20] sm:$0xff]
    %v74 = vld [vmem:[#allocation2 + $0x28] sm:$0xff]
    %v75 = vld [vmem:[#allocation2 + $0x30] sm:$0xff]
    %v76 = vld [vmem:[#allocation2 + $0x38] sm:$0xff]
    %v77 = vld [vmem:[#allocation2 + $0x40] sm:$0xff]
    %v78 = vld [vmem:[#allocation2 + $0x48] sm:$0xff]
    %v79 = vld [vmem:[#allocation2 + $0x50] sm:$0xff]
    %v80 = vld [vmem:[#allocation2 + $0x58] sm:$0xff]
    %v81 = vld [vmem:[#allocation2 + $0x60] sm:$0xff]
    %v82 = vld [vmem:[#allocation2 + $0x68] sm:$0xff]
    %v83 = vld [vmem:[#allocation2 + $0x70] sm:$0xff]
    %v84 = vld [vmem:[#allocation2 + $0x78] sm:$0xff]
    %v85 = vld [vmem:[#allocation3] sm:$0xff]
    %v86 = vld [vmem:[#allocation3 + $0x8] sm:$0xff]
    %v87 = vld [vmem:[#allocation3 + $0x10] sm:$0xff]
    %v88 = vld [vmem:[#allocation3 + $0x18] sm:$0xff]
    %v89 = vld [vmem:[#allocation3 + $0x20] sm:$0xff]
    %v90 = vld [vmem:[#allocation3 + $0x28] sm:$0xff]
    %v91 = vld [vmem:[#allocation3 + $0x30] sm:$0xff]
    %v92 = vld [vmem:[#allocation3 + $0x38] sm:$0xff]
    %v93 = vld [vmem:[#allocation3 + $0x40] sm:$0xff]
    %v94 = vld [vmem:[#allocation3 + $0x48] sm:$0xff]
    %v95 = vld [vmem:[#allocation3 + $0x50] sm:$0xff]
    %v96 = vld [vmem:[#allocation3 + $0x58] sm:$0xff]
    %v97 = vld [vmem:[#allocation3 + $0x60] sm:$0xff]
    %v98 = vld [vmem:[#allocation3 + $0x68] sm:$0xff]
    %v99 = vld [vmem:[#allocation3 + $0x70] sm:$0xff]
    %v100 = vld [vmem:[#allocation3 + $0x78] sm:$0xff]
    %v101 = vld [vmem:[#allocation6] sm:$0xff]
    %v102 = vld [vmem:[#allocation6 + $0x8] sm:$0xff]
    %v103 = vld [vmem:[#allocation6 + $0x10] sm:$0xff]
    %v104 = vld [vmem:[#allocation6 + $0x18] sm:$0xff]
    %v105 = vld [vmem:[#allocation6 + $0x20] sm:$0xff]
    %v106 = vld [vmem:[#allocation6 + $0x28] sm:$0xff]
    %v107 = vld [vmem:[#allocation6 + $0x30] sm:$0xff]
    %v108 = vld [vmem:[#allocation6 + $0x38] sm:$0xff]
    %v109 = vld [vmem:[#allocation6 + $0x40] sm:$0xff]
    %v110 = vld [vmem:[#allocation6 + $0x48] sm:$0xff]
    %v111 = vld [vmem:[#allocation6 + $0x50] sm:$0xff]
    %v112 = vld [vmem:[#allocation6 + $0x58] sm:$0xff]
    %v113 = vld [vmem:[#allocation6 + $0x60] sm:$0xff]
    %v114 = vld [vmem:[#allocation6 + $0x68] sm:$0xff]
    %v115 = vld [vmem:[#allocation6 + $0x70] sm:$0xff]
    %v116 = vld [vmem:[#allocation6 + $0x78] sm:$0xff]
    %117 = vmatprep.subr.mxu0 0.0
    %118 = vmatpush1.msra.mxu0 %v116
    %119 = vmatprep.subr.mxu0 0.0
    %120 = vmatpush1.msra.mxu0 %v115
    %121 = vmatprep.subr.mxu0 0.0
    %122 = vmatpush1.msra.mxu0 %v114
    %123 = vmatprep.subr.mxu0 0.0
    %124 = vmatpush1.msra.mxu0 %v113
    %125 = vmatprep.subr.mxu0 0.0
    %126 = vmatpush1.msra.mxu0 %v112
    %127 = vmatprep.subr.mxu0 0.0
    %128 = vmatpush1.msra.mxu0 %v111
    %129 = vmatprep.subr.mxu0 0.0
    %130 = vmatpush1.msra.mxu0 %v110
    %131 = vmatprep.subr.mxu0 0.0
    %132 = vmatpush1.msra.mxu0 %v109
    %133 = vmatprep.subr.mxu0 0.0
    %134 = vmatpush1.msra.mxu0 %v108
    %135 = vmatprep.subr.mxu0 0.0
    %136 = vmatpush1.msra.mxu0 %v107
    %137 = vmatprep.subr.mxu0 0.0
    %138 = vmatpush1.msra.mxu0 %v106
    %139 = vmatprep.subr.mxu0 0.0
    %140 = vmatpush1.msra.mxu0 %v105
    %141 = vmatprep.subr.mxu0 0.0
    %142 = vmatpush1.msra.mxu0 %v104
    %143 = vmatprep.subr.mxu0 0.0
    %144 = vmatpush1.msra.mxu0 %v103
    %145 = vmatprep.subr.mxu0 0.0
    %146 = vmatpush1.msra.mxu0 %v102
    %147 = vmatprep.subr.mxu0 0.0
    %148 = vmatpush1.msra.mxu0 %v101
    %149 = vmatprep.subr.mxu0 0.0
    %150 = vmatpush2.msra.mxu0 0.0
    %151 = vmatprep.subr.mxu0 0.0
    %152 = vmatpush2.msra.mxu0 0.0
    %153 = vmatprep.subr.mxu0 0.0
    %154 = vmatpush2.msra.mxu0 0.0
    %155 = vmatprep.subr.mxu0 0.0
    %156 = vmatpush2.msra.mxu0 0.0
    %157 = vmatprep.subr.mxu0 0.0
    %158 = vmatpush2.msra.mxu0 0.0
    %159 = vmatprep.subr.mxu0 0.0
    %160 = vmatpush2.msra.mxu0 0.0
    %161 = vmatprep.subr.mxu0 0.0
    %162 = vmatpush2.msra.mxu0 0.0
    %163 = vmatprep.subr.mxu0 0.0
    %164 = vmatpush2.msra.mxu0 0.0
    %165 = vmatprep.subr.mxu0 0.0
    %166 = vmatpush2.msra.mxu0 0.0
    %167 = vmatprep.subr.mxu0 0.0
    %168 = vmatpush2.msra.mxu0 0.0
    %169 = vmatprep.subr.mxu0 0.0
    %170 = vmatpush2.msra.mxu0 0.0
    %171 = vmatprep.subr.mxu0 0.0
    %172 = vmatpush2.msra.mxu0 0.0
    %173 = vmatprep.subr.mxu0 0.0
    %174 = vmatpush2.msra.mxu0 0.0
    %175 = vmatprep.subr.mxu0 0.0
    %176 = vmatpush2.msra.mxu0 0.0
    %177 = vmatprep.subr.mxu0 0.0
    %178 = vmatpush2.msra.mxu0 0.0
    %179 = vmatprep.subr.mxu0 0.0
    %180 = vmatpush2.msra.mxu0 0.0
    %181 = vmatprep.mubr.f32.mxu0 0.0
    %182 = vmatmul.mubr.f32.gmra.mxu0 %v85
    %v183 = vpop.f32.mrf.mxu0
    %v184 = vadd.f32 0.0, %v183
    %v185 = vpop.f32.mrf.mxu0
    %186 = vmatprep.mubr.f32.mxu0 0.0
    %187 = vmatmul.mubr.f32.gmra.mxu0 %v86
    %v188 = vpop.f32.mrf.mxu0
    %v189 = vadd.f32 0.0, %v188
    %v190 = vpop.f32.mrf.mxu0
    %191 = vmatprep.mubr.f32.mxu0 0.0
    %192 = vmatmul.mubr.f32.gmra.mxu0 %v87
    %v193 = vpop.f32.mrf.mxu0
    %v194 = vadd.f32 0.0, %v193
    %v195 = vpop.f32.mrf.mxu0
    %196 = vmatprep.mubr.f32.mxu0 0.0
    %197 = vmatmul.mubr.f32.gmra.mxu0 %v88
    %v198 = vpop.f32.mrf.mxu0
    %v199 = vadd.f32 0.0, %v198
    %v200 = vpop.f32.mrf.mxu0
    %201 = vmatprep.mubr.f32.mxu0 0.0
    %202 = vmatmul.mubr.f32.gmra.mxu0 %v89
    %v203 = vpop.f32.mrf.mxu0
    %v204 = vadd.f32 0.0, %v203
    %v205 = vpop.f32.mrf.mxu0
    %206 = vmatprep.mubr.f32.mxu0 0.0
    %207 = vmatmul.mubr.f32.gmra.mxu0 %v90
    %v208 = vpop.f32.mrf.mxu0
    %v209 = vadd.f32 0.0, %v208
    %v210 = vpop.f32.mrf.mxu0
    %211 = vmatprep.mubr.f32.mxu0 0.0
    %212 = vmatmul.mubr.f32.gmra.mxu0 %v91
    %v213 = vpop.f32.mrf.mxu0
    %v214 = vadd.f32 0.0, %v213
    %v215 = vpop.f32.mrf.mxu0
    %216 = vmatprep.mubr.f32.mxu0 0.0
    %217 = vmatmul.mubr.f32.gmra.mxu0 %v92
    %v218 = vpop.f32.mrf.mxu0
    %v219 = vadd.f32 0.0, %v218
    %v220 = vpop.f32.mrf.mxu0
    %221 = vmatprep.mubr.f32.mxu0 0.0
    %222 = vmatmul.mubr.f32.gmra.mxu0 %v93
    %v223 = vpop.f32.mrf.mxu0
    %v224 = vadd.f32 0.0, %v223
    %v225 = vpop.f32.mrf.mxu0
    %226 = vmatprep.mubr.f32.mxu0 0.0
    %227 = vmatmul.mubr.f32.gmra.mxu0 %v94
    %v228 = vpop.f32.mrf.mxu0
    %v229 = vadd.f32 0.0, %v228
    %v230 = vpop.f32.mrf.mxu0
    %231 = vmatprep.mubr.f32.mxu0 0.0
    %232 = vmatmul.mubr.f32.gmra.mxu0 %v95
    %v233 = vpop.f32.mrf.mxu0
    %v234 = vadd.f32 0.0, %v233
    %v235 = vpop.f32.mrf.mxu0
    %236 = vmatprep.mubr.f32.mxu0 0.0
    %237 = vmatmul.mubr.f32.gmra.mxu0 %v96
    %v238 = vpop.f32.mrf.mxu0
    %v239 = vadd.f32 0.0, %v238
    %v240 = vpop.f32.mrf.mxu0
    %241 = vmatprep.mubr.f32.mxu0 0.0
    %242 = vmatmul.mubr.f32.gmra.mxu0 %v97
    %v243 = vpop.f32.mrf.mxu0
    %v244 = vadd.f32 0.0, %v243
    %v245 = vpop.f32.mrf.mxu0
    %246 = vmatprep.mubr.f32.mxu0 0.0
    %247 = vmatmul.mubr.f32.gmra.mxu0 %v98
    %v248 = vpop.f32.mrf.mxu0
    %v249 = vadd.f32 0.0, %v248
    %v250 = vpop.f32.mrf.mxu0
    %251 = vmatprep.mubr.f32.mxu0 0.0
    %252 = vmatmul.mubr.f32.gmra.mxu0 %v99
    %v253 = vpop.f32.mrf.mxu0
    %v254 = vadd.f32 0.0, %v253
    %v255 = vpop.f32.mrf.mxu0
    %256 = vmatprep.mubr.f32.mxu0 0.0
    %257 = vmatmul.mubr.f32.gmra.mxu0 %v100
    %v258 = vpop.f32.mrf.mxu0
    %v259 = vadd.f32 0.0, %v258
    %v260 = vpop.f32.mrf.mxu0
    %261 = vdwg.mxu0
    %v262 = vadd.f32 %v69, %v184
    %v263 = vadd.f32 %v70, %v189
    %v264 = vadd.f32 %v71, %v194
    %v265 = vadd.f32 %v72, %v199
    %v266 = vadd.f32 %v73, %v204
    %v267 = vadd.f32 %v74, %v209
    %v268 = vadd.f32 %v75, %v214
    %v269 = vadd.f32 %v76, %v219
    %v270 = vadd.f32 %v77, %v224
    %v271 = vadd.f32 %v78, %v229
    %v272 = vadd.f32 %v79, %v234
    %v273 = vadd.f32 %v80, %v239
    %v274 = vadd.f32 %v81, %v244
    %v275 = vadd.f32 %v82, %v249
    %v276 = vadd.f32 %v83, %v254
    %v277 = vadd.f32 %v84, %v259
    %278 = vst [vmem:[#allocation2] sm:$0xff] %v262
    %279 = vst [vmem:[#allocation2 + $0x8] sm:$0xff] %v263
    %280 = vst [vmem:[#allocation2 + $0x10] sm:$0xff] %v264
    %281 = vst [vmem:[#allocation2 + $0x18] sm:$0xff] %v265
    %282 = vst [vmem:[#allocation2 + $0x20] sm:$0xff] %v266
    %283 = vst [vmem:[#allocation2 + $0x28] sm:$0xff] %v267
    %284 = vst [vmem:[#allocation2 + $0x30] sm:$0xff] %v268
    %285 = vst [vmem:[#allocation2 + $0x38] sm:$0xff] %v269
    %286 = vst [vmem:[#allocation2 + $0x40] sm:$0xff] %v270
    %287 = vst [vmem:[#allocation2 + $0x48] sm:$0xff] %v271
    %288 = vst [vmem:[#allocation2 + $0x50] sm:$0xff] %v272
    %289 = vst [vmem:[#allocation2 + $0x58] sm:$0xff] %v273
    %290 = vst [vmem:[#allocation2 + $0x60] sm:$0xff] %v274
    %291 = vst [vmem:[#allocation2 + $0x68] sm:$0xff] %v275
    %292 = vst [vmem:[#allocation2 + $0x70] sm:$0xff] %v276
    %293 = vst [vmem:[#allocation2 + $0x78] sm:$0xff] %v277
    // Predicated region
    $region34: #{tpu_custom_call.1} parent=1 // pred_check
      %p294 = pneg %p49
    $region35: #{tpu_custom_call.1} parent=1 // pred_check_branch
      %296 = sbr.rel (%p294) target = $region37
    $region36: #{tpu_custom_call.1} parent=1 // pred_region
      %v297 = vld [vmem:[#allocation2] sm:$0xff]
      %v298 = vld [vmem:[#allocation2 + $0x8] sm:$0xff]
      %v299 = vld [vmem:[#allocation2 + $0x10] sm:$0xff]
      %v300 = vld [vmem:[#allocation2 + $0x18] sm:$0xff]
      %v301 = vld [vmem:[#allocation2 + $0x20] sm:$0xff]
      %v302 = vld [vmem:[#allocation2 + $0x28] sm:$0xff]
      %v303 = vld [vmem:[#allocation2 + $0x30] sm:$0xff]
      %v304 = vld [vmem:[#allocation2 + $0x38] sm:$0xff]
      %v305 = vld [vmem:[#allocation2 + $0x40] sm:$0xff]
      %v306 = vld [vmem:[#allocation2 + $0x48] sm:$0xff]
      %v307 = vld [vmem:[#allocation2 + $0x50] sm:$0xff]
      %v308 = vld [vmem:[#allocation2 + $0x58] sm:$0xff]
      %v309 = vld [vmem:[#allocation2 + $0x60] sm:$0xff]
      %v310 = vld [vmem:[#allocation2 + $0x68] sm:$0xff]
      %v311 = vld [vmem:[#allocation2 + $0x70] sm:$0xff]
      %v312 = vld [vmem:[#allocation2 + $0x78] sm:$0xff]
      %v313 = vld [vmem:[%s2] sm:$0x1]
      %v315 = vlaneseq
      %v316 = vshrl.u32 %v315, 7
      %v317 = vsub.s32 0, %v316
      %v318 = vrot.slane %v313, %v317
      %v320 = vadd.f32 %v297, %v318
      %v321 = vadd.f32 %v298, %v318
      %v322 = vadd.f32 %v299, %v318
      %v323 = vadd.f32 %v300, %v318
      %v324 = vadd.f32 %v301, %v318
      %v325 = vadd.f32 %v302, %v318
      %v326 = vadd.f32 %v303, %v318
      %v327 = vadd.f32 %v304, %v318
      %v328 = vadd.f32 %v305, %v318
      %v329 = vadd.f32 %v306, %v318
      %v330 = vadd.f32 %v307, %v318
      %v331 = vadd.f32 %v308, %v318
      %v332 = vadd.f32 %v309, %v318
      %v333 = vadd.f32 %v310, %v318
      %v334 = vadd.f32 %v311, %v318
      %v335 = vadd.f32 %v312, %v318
      %v336 = vlaneseq
      %v337 = vand.u32 %v336, 127
      %vm338 = vcmp.lt.s32.totalorder %v337, 32
      %v339 = vsel %vm338, %v320, 0.0
      %v340 = vsel %vm338, %v321, 0.0
      %v341 = vsel %vm338, %v322, 0.0
      %v342 = vsel %vm338, %v323, 0.0
      %v343 = vsel %vm338, %v324, 0.0
      %v344 = vsel %vm338, %v325, 0.0
      %v345 = vsel %vm338, %v326, 0.0
      %v346 = vsel %vm338, %v327, 0.0
      %v347 = vsel %vm338, %v328, 0.0
      %v348 = vsel %vm338, %v329, 0.0
      %v349 = vsel %vm338, %v330, 0.0
      %v350 = vsel %vm338, %v331, 0.0
      %v351 = vsel %vm338, %v332, 0.0
      %v352 = vsel %vm338, %v333, 0.0
      %v353 = vsel %vm338, %v334, 0.0
      %v354 = vsel %vm338, %v335, 0.0
      %355 = vadd.xlane.f32.xlu0 %v339
      %v356 = vpop.xlane.xlu0 %355
      %357 = vadd.xlane.f32.xlu0 %v340
      %v358 = vpop.xlane.xlu0 %357
      %359 = vadd.xlane.f32.xlu0 %v341
      %v360 = vpop.xlane.xlu0 %359
      %361 = vadd.xlane.f32.xlu0 %v342
      %v362 = vpop.xlane.xlu0 %361
      %363 = vadd.xlane.f32.xlu0 %v343
      %v364 = vpop.xlane.xlu0 %363
      %365 = vadd.xlane.f32.xlu0 %v344
      %v366 = vpop.xlane.xlu0 %365
      %367 = vadd.xlane.f32.xlu0 %v345
      %v368 = vpop.xlane.xlu0 %367
      %369 = vadd.xlane.f32.xlu0 %v346
      %v370 = vpop.xlane.xlu0 %369
      %371 = vadd.xlane.f32.xlu0 %v347
      %v372 = vpop.xlane.xlu0 %371
      %373 = vadd.xlane.f32.xlu0 %v348
      %v374 = vpop.xlane.xlu0 %373
      %375 = vadd.xlane.f32.xlu0 %v349
      %v376 = vpop.xlane.xlu0 %375
      %377 = vadd.xlane.f32.xlu0 %v350
      %v378 = vpop.xlane.xlu0 %377
      %379 = vadd.xlane.f32.xlu0 %v351
      %v380 = vpop.xlane.xlu0 %379
      %381 = vadd.xlane.f32.xlu0 %v352
      %v382 = vpop.xlane.xlu0 %381
      %383 = vadd.xlane.f32.xlu0 %v353
      %v384 = vpop.xlane.xlu0 %383
      %385 = vadd.xlane.f32.xlu0 %v354
      %v386 = vpop.xlane.xlu0 %385
      %v387 = vmul.f32 %v356, 0.03125
      %v388 = vmul.f32 %v358, 0.03125
      %v389 = vmul.f32 %v360, 0.03125
      %v390 = vmul.f32 %v362, 0.03125
      %v391 = vmul.f32 %v364, 0.03125
      %v392 = vmul.f32 %v366, 0.03125
      %v393 = vmul.f32 %v368, 0.03125
      %v394 = vmul.f32 %v370, 0.03125
      %v395 = vmul.f32 %v372, 0.03125
      %v396 = vmul.f32 %v374, 0.03125
      %v397 = vmul.f32 %v376, 0.03125
      %v398 = vmul.f32 %v378, 0.03125
      %v399 = vmul.f32 %v380, 0.03125
      %v400 = vmul.f32 %v382, 0.03125
      %v401 = vmul.f32 %v384, 0.03125
      %v402 = vmul.f32 %v386, 0.03125
      %v403 = vsub.f32 %v339, %v387
      %v404 = vsub.f32 %v340, %v388
      %v405 = vsub.f32 %v341, %v389
      %v406 = vsub.f32 %v342, %v390
      %v407 = vsub.f32 %v343, %v391
      %v408 = vsub.f32 %v344, %v392
      %v409 = vsub.f32 %v345, %v393
      %v410 = vsub.f32 %v346, %v394
      %v411 = vsub.f32 %v347, %v395
      %v412 = vsub.f32 %v348, %v396
      %v413 = vsub.f32 %v349, %v397
      %v414 = vsub.f32 %v350, %v398
      %v415 = vsub.f32 %v351, %v399
      %v416 = vsub.f32 %v352, %v400
      %v417 = vsub.f32 %v353, %v401
      %v418 = vsub.f32 %v354, %v402
      %v419 = vsel %vm338, %v403, 0.0
      %v420 = vsel %vm338, %v404, 0.0
      %v421 = vsel %vm338, %v405, 0.0
      %v422 = vsel %vm338, %v406, 0.0
      %v423 = vsel %vm338, %v407, 0.0
      %v424 = vsel %vm338, %v408, 0.0
      %v425 = vsel %vm338, %v409, 0.0
      %v426 = vsel %vm338, %v410, 0.0
      %v427 = vsel %vm338, %v411, 0.0
      %v428 = vsel %vm338, %v412, 0.0
      %v429 = vsel %vm338, %v413, 0.0
      %v430 = vsel %vm338, %v414, 0.0
      %v431 = vsel %vm338, %v415, 0.0
      %v432 = vsel %vm338, %v416, 0.0
      %v433 = vsel %vm338, %v417, 0.0
      %v434 = vsel %vm338, %v418, 0.0
      %v435 = vmul.f32 %v419, %v419
      %v436 = vmul.f32 %v420, %v420
      %v437 = vmul.f32 %v421, %v421
      %v438 = vmul.f32 %v422, %v422
      %v439 = vmul.f32 %v423, %v423
      %v440 = vmul.f32 %v424, %v424
      %v441 = vmul.f32 %v425, %v425
      %v442 = vmul.f32 %v426, %v426
      %v443 = vmul.f32 %v427, %v427
      %v444 = vmul.f32 %v428, %v428
      %v445 = vmul.f32 %v429, %v429
      %v446 = vmul.f32 %v430, %v430
      %v447 = vmul.f32 %v431, %v431
      %v448 = vmul.f32 %v432, %v432
      %v449 = vmul.f32 %v433, %v433
      %v450 = vmul.f32 %v434, %v434
      %451 = vadd.xlane.f32.xlu0 %v435
      %v452 = vpop.xlane.xlu0 %451
      %453 = vadd.xlane.f32.xlu0 %v436
      %v454 = vpop.xlane.xlu0 %453
      %455 = vadd.xlane.f32.xlu0 %v437
      %v456 = vpop.xlane.xlu0 %455
      %457 = vadd.xlane.f32.xlu0 %v438
      %v458 = vpop.xlane.xlu0 %457
      %459 = vadd.xlane.f32.xlu0 %v439
      %v460 = vpop.xlane.xlu0 %459
      %461 = vadd.xlane.f32.xlu0 %v440
      %v462 = vpop.xlane.xlu0 %461
      %463 = vadd.xlane.f32.xlu0 %v441
      %v464 = vpop.xlane.xlu0 %463
      %465 = vadd.xlane.f32.xlu0 %v442
      %v466 = vpop.xlane.xlu0 %465
      %467 = vadd.xlane.f32.xlu0 %v443
      %v468 = vpop.xlane.xlu0 %467
      %469 = vadd.xlane.f32.xlu0 %v444
      %v470 = vpop.xlane.xlu0 %469
      %471 = vadd.xlane.f32.xlu0 %v445
      %v472 = vpop.xlane.xlu0 %471
      %473 = vadd.xlane.f32.xlu0 %v446
      %v474 = vpop.xlane.xlu0 %473
      %475 = vadd.xlane.f32.xlu0 %v447
      %v476 = vpop.xlane.xlu0 %475
      %477 = vadd.xlane.f32.xlu0 %v448
      %v478 = vpop.xlane.xlu0 %477
      %479 = vadd.xlane.f32.xlu0 %v449
      %v480 = vpop.xlane.xlu0 %479
      %481 = vadd.xlane.f32.xlu0 %v450
      %v482 = vpop.xlane.xlu0 %481
      %v483 = vmul.f32 %v452, 0.03125
      %v484 = vmul.f32 %v454, 0.03125
      %v485 = vmul.f32 %v456, 0.03125
      %v486 = vmul.f32 %v458, 0.03125
      %v487 = vmul.f32 %v460, 0.03125
      %v488 = vmul.f32 %v462, 0.03125
      %v489 = vmul.f32 %v464, 0.03125
      %v490 = vmul.f32 %v466, 0.03125
      %v491 = vmul.f32 %v468, 0.03125
      %v492 = vmul.f32 %v470, 0.03125
      %v493 = vmul.f32 %v472, 0.03125
      %v494 = vmul.f32 %v474, 0.03125
      %v495 = vmul.f32 %v476, 0.03125
      %v496 = vmul.f32 %v478, 0.03125
      %v497 = vmul.f32 %v480, 0.03125
      %v498 = vmul.f32 %v482, 0.03125
      %v499 = vadd.f32 %v483, 1e-05
      %v500 = vadd.f32 %v484, 1e-05
      %v501 = vadd.f32 %v485, 1e-05
      %v502 = vadd.f32 %v486, 1e-05
      %v503 = vadd.f32 %v487, 1e-05
      %v504 = vadd.f32 %v488, 1e-05
      %v505 = vadd.f32 %v489, 1e-05
      %v506 = vadd.f32 %v490, 1e-05
      %v507 = vadd.f32 %v491, 1e-05
      %v508 = vadd.f32 %v492, 1e-05
      %v509 = vadd.f32 %v493, 1e-05
      %v510 = vadd.f32 %v494, 1e-05
      %v511 = vadd.f32 %v495, 1e-05
      %v512 = vadd.f32 %v496, 1e-05
      %v513 = vadd.f32 %v497, 1e-05
      %v514 = vadd.f32 %v498, 1e-05
      %v515 = vrsqrt.pop %v499
      %v516 = vrsqrt.pop %v500
      %v517 = vrsqrt.pop %v501
      %v518 = vrsqrt.pop %v502
      %v519 = vrsqrt.pop %v503
      %v520 = vrsqrt.pop %v504
      %v521 = vrsqrt.pop %v505
      %v522 = vrsqrt.pop %v506
      %v523 = vrsqrt.pop %v507
      %v524 = vrsqrt.pop %v508
      %v525 = vrsqrt.pop %v509
      %v526 = vrsqrt.pop %v510
      %v527 = vrsqrt.pop %v511
      %v528 = vrsqrt.pop %v512
      %v529 = vrsqrt.pop %v513
      %v530 = vrsqrt.pop %v514
      %v531 = vmul.f32 %v419, %v515
      %v532 = vmul.f32 %v420, %v516
      %v533 = vmul.f32 %v421, %v517
      %v534 = vmul.f32 %v422, %v518
      %v535 = vmul.f32 %v423, %v519
      %v536 = vmul.f32 %v424, %v520
      %v537 = vmul.f32 %v425, %v521
      %v538 = vmul.f32 %v426, %v522
      %v539 = vmul.f32 %v427, %v523
      %v540 = vmul.f32 %v428, %v524
      %v541 = vmul.f32 %v429, %v525
      %v542 = vmul.f32 %v430, %v526
      %v543 = vmul.f32 %v431, %v527
      %v544 = vmul.f32 %v432, %v528
      %v545 = vmul.f32 %v433, %v529
      %v546 = vmul.f32 %v434, %v530
      %v547 = vld [vmem:[%s3] sm:$0x1]
      %v549 = vlaneseq
      %v550 = vshrl.u32 %v549, 7
      %v551 = vsub.s32 0, %v550
      %v552 = vrot.slane %v547, %v551
      %v554 = vmul.f32 %v531, %v552
      %v555 = vmul.f32 %v532, %v552
      %v556 = vmul.f32 %v533, %v552
      %v557 = vmul.f32 %v534, %v552
      %v558 = vmul.f32 %v535, %v552
      %v559 = vmul.f32 %v536, %v552
      %v560 = vmul.f32 %v537, %v552
      %v561 = vmul.f32 %v538, %v552
      %v562 = vmul.f32 %v539, %v552
      %v563 = vmul.f32 %v540, %v552
      %v564 = vmul.f32 %v541, %v552
      %v565 = vmul.f32 %v542, %v552
      %v566 = vmul.f32 %v543, %v552
      %v567 = vmul.f32 %v544, %v552
      %v568 = vmul.f32 %v545, %v552
      %v569 = vmul.f32 %v546, %v552
      %v570 = vld [vmem:[%s4] sm:$0x1]
      %v572 = vlaneseq
      %v573 = vshrl.u32 %v572, 7
      %v574 = vsub.s32 0, %v573
      %v575 = vrot.slane %v570, %v574
      %v577 = vadd.f32 %v554, %v575
      %v578 = vadd.f32 %v555, %v575
      %v579 = vadd.f32 %v556, %v575
      %v580 = vadd.f32 %v557, %v575
      %v581 = vadd.f32 %v558, %v575
      %v582 = vadd.f32 %v559, %v575
      %v583 = vadd.f32 %v560, %v575
      %v584 = vadd.f32 %v561, %v575
      %v585 = vadd.f32 %v562, %v575
      %v586 = vadd.f32 %v563, %v575
      %v587 = vadd.f32 %v564, %v575
      %v588 = vadd.f32 %v565, %v575
      %v589 = vadd.f32 %v566, %v575
      %v590 = vadd.f32 %v567, %v575
      %v591 = vadd.f32 %v568, %v575
      %v592 = vadd.f32 %v569, %v575
      %593 = vst [vmem:[#allocation8] sm:$0xff] %v577
      %594 = vst [vmem:[#allocation8 + $0x8] sm:$0xff] %v578
      %595 = vst [vmem:[#allocation8 + $0x10] sm:$0xff] %v579
      %596 = vst [vmem:[#allocation8 + $0x18] sm:$0xff] %v580
      %597 = vst [vmem:[#allocation8 + $0x20] sm:$0xff] %v581
      %598 = vst [vmem:[#allocation8 + $0x28] sm:$0xff] %v582
      %599 = vst [vmem:[#allocation8 + $0x30] sm:$0xff] %v583
      %600 = vst [vmem:[#allocation8 + $0x38] sm:$0xff] %v584
      %601 = vst [vmem:[#allocation8 + $0x40] sm:$0xff] %v585
      %602 = vst [vmem:[#allocation8 + $0x48] sm:$0xff] %v586
      %603 = vst [vmem:[#allocation8 + $0x50] sm:$0xff] %v587
      %604 = vst [vmem:[#allocation8 + $0x58] sm:$0xff] %v588
      %605 = vst [vmem:[#allocation8 + $0x60] sm:$0xff] %v589
      %606 = vst [vmem:[#allocation8 + $0x68] sm:$0xff] %v590
      %607 = vst [vmem:[#allocation8 + $0x70] sm:$0xff] %v591
      %608 = vst [vmem:[#allocation8 + $0x78] sm:$0xff] %v592
    $region37: #{tpu_custom_call.1} parent=1 // pred_fallthru
      _
    // Predicated region
    $region38: #{tpu_custom_call.1} parent=1 // pred_check
      _
    $region39: #{tpu_custom_call.1} parent=1 // pred_check_branch
      %610 = sbr.rel (0) target = $region41
    $region40: #{tpu_custom_call.1} parent=1 // pred_region
      %s612 = ssub.s32 2048, 2048
      %613 = vsyncadd [#allocation5], %s612
      %s614 = sshll.u32 [#allocation8], 4
      %s615 = int_to_ptr.vmem [resolvable:$true] %s614
      %620 = dma.vmem_to_hbm [thread:$0]  %s615, 2048, %s5, [#allocation5], 128, 128, 8
    $region41: #{tpu_custom_call.1} parent=1 // pred_fallthru
      _
    // Predicated region
    $region42: #{tpu_custom_call.1} parent=1 // pred_check
      _
    $region43: #{tpu_custom_call.1} parent=1 // pred_check_branch
      %622 = sbr.rel (0) target = $region45
    $region44: #{tpu_custom_call.1} parent=1 // pred_region
      %623 = dma.done [#allocation5], 2048
    $region45: #{tpu_custom_call.1} parent=1 // pred_fallthru
      _
    %624 = vsyncpa [#allocation4], 1
    %625 = vsyncpa [#allocation7], 1
    %626 = vsyncpa [#allocation5], 1

</llo_original>
